<compile_context>
chip_gen: v5e
topology: v5e:2x2
jax: 0.10.0
libtpu: 0.0.40
codegen_flags: <defaults>
</compile_context>

<pallas_src>
import jax
import jax.numpy as jnp
from jax import lax
from jax.experimental import pallas as pl
from jax.experimental.pallas import tpu as pltpu

LANE = 128  # TPU lane width; each GRU gate is padded to this many lanes.


def _vmem_spec():
    return pl.BlockSpec(memory_space=pltpu.MemorySpace.VMEM)


# -----------------------------------------------------------------------------
# Offline parameter fold (done once, never per step).
# -----------------------------------------------------------------------------
def prepare_params(emb_table, w_ih, w_hh, b_ih, b_hh):
    """Fold Embedding + GRUCell parameters into lane-aligned gate tables.

    Returns:
      gx_tab_p : (T, 3*HP)  = emb @ W_ih^T + b_ih (+ b_hh[r,z]); gate g occupies
                 lanes [g*HP, g*HP+H), rest zero. Row 0 is pure bias, which
                 reproduces padding_idx=0 exactly.
      w_hh_t_p : (HP, 3*HP) = W_hh^T scattered into the same lane-aligned blocks
                 (rows >= H and pad lanes are zero).
      b_hh_n_p : (1, HP)    remaining hidden bias for the n gate (must stay inside
                 r * (.)).
    NOTE: if the underlying parameters are ever updated (training), these folded
    tables must be re-derived.
    """
    T, _ = emb_table.shape
    H = w_hh.shape[1]
    HP = ((H + LANE - 1) // LANE) * LANE

    gx_tab = emb_table @ w_ih.T + b_ih[None, :]               # (T, 3H)
    gx_tab = gx_tab.at[:, :2 * H].add(b_hh[None, :2 * H])     # fold b_hh for r, z
    w_hh_t = w_hh.T                                           # (H, 3H)

    gx_tab_p = jnp.zeros((T, 3 * HP), jnp.float32)
    w_hh_t_p = jnp.zeros((HP, 3 * HP), jnp.float32)
    for g in range(3):
        gx_tab_p = gx_tab_p.at[:, g * HP:g * HP + H].set(gx_tab[:, g * H:(g + 1) * H])
        w_hh_t_p = w_hh_t_p.at[:H, g * HP:g * HP + H].set(w_hh_t[:, g * H:(g + 1) * H])
    b_hh_n_p = jnp.zeros((1, HP), jnp.float32).at[0, :H].set(b_hh[2 * H:])
    return gx_tab_p, w_hh_t_p, b_hh_n_p


# -----------------------------------------------------------------------------
# Kernel 1: single GRU step (module forward() semantics), w_hx updated in place.
# -----------------------------------------------------------------------------
def word_decoder_step_kernel(idx_ref, hx_ref, gx_tab_ref, whh_ref, bhh_n_ref, out_ref):
    B = idx_ref.shape[0]
    T = gx_tab_ref.shape[0]
    H = hx_ref.shape[1]
    HP = bhh_n_ref.shape[1]

    # Clamp indices to [0, T): matches jnp.take semantics (PyTorch would raise).
    idx = jnp.clip(idx_ref[...], 0, T - 1)                     # (B, 1) int32
    h = hx_ref[...]                                            # (B, H) f32

    # Embedding lookup + input projection + biases fused into ONE one-hot matmul.
    iota = lax.broadcasted_iota(jnp.int32, (B, T), 1)
    onehot = (iota == idx).astype(jnp.float32)                 # (B, T)
    gx = jnp.dot(onehot, gx_tab_ref[...],
                 preferred_element_type=jnp.float32)           # (B, 3*HP)

    # Hidden projection (bias-free; b_hh[r,z] already folded into gx).
    gh = jnp.dot(h, whh_ref[0:H, :],
                 preferred_element_type=jnp.float32)           # (B, 3*HP)

    # GRU gates, PyTorch order [r, z, n]; slices are lane-aligned (0 / HP / 2*HP).
    r = jax.nn.sigmoid(gx[:, 0:HP] + gh[:, 0:HP])
    z = jax.nn.sigmoid(gx[:, HP:2 * HP] + gh[:, HP:2 * HP])
    n = jnp.tanh(gx[:, 2 * HP:] + r * (gh[:, 2 * HP:] + bhh_n_ref[...]))

    out_ref[...] = (1.0 - z[:, 0:H]) * n[:, 0:H] + z[:, 0:H] * h


# -----------------------------------------------------------------------------
# Kernel 2: S fused GRU steps (== S sequential forward() calls) in one launch.
# -----------------------------------------------------------------------------
def word_decoder_seq_kernel(idx_ref, hx_ref, gx_tab_ref, whh_ref, bhh_n_ref,
                            hs_ref, gx_scr):
    SB = idx_ref.shape[0]                                      # S * B
    T = gx_tab_ref.shape[0]
    S, B, H = hs_ref.shape
    HP = bhh_n_ref.shape[1]

    # ---- hoisted token-side work: ALL steps' input gates in one MXU matmul ----
    idx = jnp.clip(idx_ref[...], 0, T - 1)                     # (S*B, 1)
    iota = lax.broadcasted_iota(jnp.int32, (SB, T), 1)
    onehot = (iota == idx).astype(jnp.float32)                 # (S*B, T)
    gx_scr[...] = jnp.dot(onehot, gx_tab_ref[...],
                          preferred_element_type=jnp.float32)  # (S*B, 3*HP)

    bhh_n = bhh_n_ref[...]                                     # (1, HP), hoisted

    # ---- serial GRU recurrence: h stays in vregs, outputs stay in VMEM ----
    def step(s, h):
        off = pl.multiple_of(s * B, B)
        gx = gx_scr[pl.ds(off, B), :]                          # (B, 3*HP)
        gh = jnp.dot(h, whh_ref[...],
                     preferred_element_type=jnp.float32)       # (B, 3*HP)
        r = jax.nn.sigmoid(gx[:, 0:HP] + gh[:, 0:HP])
        z = jax.nn.sigmoid(gx[:, HP:2 * HP] + gh[:, HP:2 * HP])
        n = jnp.tanh(gx[:, 2 * HP:] + r * (gh[:, 2 * HP:] + bhh_n))
        h_new = (1.0 - z) * n + z * h                          # (B, HP); pad lanes stay 0
        hs_ref[s] = h_new[:, 0:H]                              # VMEM store; 1 HBM DMA at end
        return h_new

    lax.fori_loop(0, S, step, hx_ref[...], unroll=True)


# -----------------------------------------------------------------------------
# Wrappers
# -----------------------------------------------------------------------------
@jax.jit
def word_decoder_forward(summary_words, w_hx, gx_tab_p, w_hh_t_p, b_hh_n_p):
    """Single GRU step; exactly WordDecoder.forward(summary_words, w_hx)."""
    B = summary_words.shape[0]
    H = w_hx.shape[1]
    idx2d = summary_words.astype(jnp.int32).reshape(B, 1)
    return pl.pallas_call(
        word_decoder_step_kernel,
        out_shape=jax.ShapeDtypeStruct((B, H), jnp.float32),
        in_specs=[_vmem_spec()] * 5,
        out_specs=_vmem_spec(),
        input_output_aliases={1: 0},          # donate w_hx; new hidden written in place
    )(idx2d, w_hx.astype(jnp.float32), gx_tab_p, w_hh_t_p, b_hh_n_p)


@jax.jit
def word_decoder_decode(summary_words_seq, w_hx, gx_tab_p, w_hh_t_p, b_hh_n_p):
    """S fused GRU steps (equivalent to S sequential forward() calls) in ONE launch.

    summary_words_seq: (S, B) int tokens; w_hx: (B, H) initial hidden.
    Returns all per-step hidden states (S, B, H); the final hidden is result[-1].
    """
    S, B = summary_words_seq.shape
    H = w_hx.shape[1]
    HP = b_hh_n_p.shape[1]
    idx2d = summary_words_seq.astype(jnp.int32).reshape(S * B, 1)
    hx_p = jnp.pad(w_hx.astype(jnp.float32), ((0, 0), (0, HP - H)))
    return pl.pallas_call(
        word_decoder_seq_kernel,
        out_shape=jax.ShapeDtypeStruct((S, B, H), jnp.float32),
        in_specs=[_vmem_spec()] * 5,
        out_specs=_vmem_spec(),
        scratch_shapes=[pltpu.VMEM((S * B, 3 * HP), jnp.float32)],
    )(idx2d, hx_p, gx_tab_p, w_hh_t_p, b_hh_n_p)


if __name__ == "__main__":
    # Small, forward-implied shapes.
    target_size = 16     # vocab (T)
    embed_size = 32      # E
    hidden_size = 32     # H
    batch = 8            # B
    seq_len = 16         # S autoregressive steps fused into one kernel launch

    key = jax.random.PRNGKey(0)
    (k_emb, k_wih, k_whh, k_bih, k_bhh, k_idx, k_seq, k_hx) = jax.random.split(key, 8)

    scale = 1.0 / jnp.sqrt(hidden_size)
    emb_table = jax.random.normal(k_emb, (target_size, embed_size), jnp.float32) * 0.1
    emb_table = emb_table.at[0].set(0.0)             # padding_idx=0

    # PyTorch GRUCell parameter shapes.
    w_ih = jax.random.uniform(k_wih, (3 * hidden_size, embed_size),
                              jnp.float32, -scale, scale)
    w_hh = jax.random.uniform(k_whh, (3 * hidden_size, hidden_size),
                              jnp.float32, -scale, scale)
    b_ih = jax.random.uniform(k_bih, (3 * hidden_size,), jnp.float32, -scale, scale)
    b_hh = jax.random.uniform(k_bhh, (3 * hidden_size,), jnp.float32, -scale, scale)

    summary_words = jax.random.randint(k_idx, (batch,), 0, target_size, jnp.int32)
    summary_words = summary_words.at[0].set(0)       # exercise padding_idx=0
    words_seq = jax.random.randint(k_seq, (seq_len, batch), 0, target_size, jnp.int32)
    words_seq = words_seq.at[0, 0].set(0)
    w_hx = jax.random.normal(k_hx, (batch, hidden_size), jnp.float32)

    # Offline parameter fold (done once).
    gx_tab_p, w_hh_t_p, b_hh_n_p = prepare_params(emb_table, w_ih, w_hh, b_ih, b_hh)

    out_step = word_decoder_forward(summary_words, w_hx, gx_tab_p, w_hh_t_p, b_hh_n_p)
    out_seq = word_decoder_decode(words_seq, w_hx, gx_tab_p, w_hh_t_p, b_hh_n_p)
    out_step, out_seq = jax.block_until_ready((out_step, out_seq))

    # Pure-JAX reference with the original (unfolded) parameters.
    H = hidden_size

    def gru_ref(idx, h):
        x = jnp.take(emb_table, idx, axis=0)
        gx = x @ w_ih.T + b_ih
        gh = h @ w_hh.T + b_hh
        r = jax.nn.sigmoid(gx[:, :H] + gh[:, :H])
        z = jax.nn.sigmoid(gx[:, H:2 * H] + gh[:, H:2 * H])
        n = jnp.tanh(gx[:, 2 * H:] + r * gh[:, 2 * H:])
        return (1.0 - z) * n + z * h

    ref_step = gru_ref(summary_words, w_hx)
    assert out_step.shape == (batch, hidden_size)
    assert jnp.allclose(out_step, ref_step, atol=1e-5, rtol=1e-5), \
        float(jnp.max(jnp.abs(out_step - ref_step)))

    h = w_hx
    ref_states = []
    for s in range(seq_len):
        h = gru_ref(words_seq[s], h)
        ref_states.append(h)
    ref_seq = jnp.stack(ref_states)
    assert out_seq.shape == (seq_len, batch, hidden_size)
    assert jnp.allclose(out_seq, ref_seq, atol=5e-5, rtol=1e-4), \
        float(jnp.max(jnp.abs(out_seq - ref_seq)))
    assert jnp.allclose(out_seq[-1], h, atol=5e-5, rtol=1e-4)

    print("KERNEL_OK")
</pallas_src>

<mosaic_0001>
module attributes {stable_mosaic.version = 11 : i64} {
  func.func @word_decoder_step_kernel(%arg0: memref<8x1xi32, #tpu.memory_space<vmem>>, %arg1: memref<8x32xf32, #tpu.memory_space<vmem>>, %arg2: memref<16x384xf32, #tpu.memory_space<vmem>>, %arg3: memref<128x384xf32, #tpu.memory_space<vmem>>, %arg4: memref<1x128xf32, #tpu.memory_space<vmem>>, %arg5: memref<8x32xf32, #tpu.memory_space<vmem>>) attributes {dimension_semantics = [], scalar_prefetch = 0 : i64, scratch_operands = 0 : i64, tpu.core_type = #tpu.core_type<tc>} {
    %c0 = arith.constant 0 : index
    %c0_0 = arith.constant 0 : index
    %0 = vector.load %arg0[%c0, %c0_0] : memref<8x1xi32, #tpu.memory_space<vmem>>, vector<8x1xi32>
    %c0_i32 = arith.constant 0 : i32
    %c15_i32 = arith.constant 15 : i32
    %1 = vector.broadcast %c0_i32 : i32 to vector<8x1xi32>
    %2 = arith.maxsi %1, %0 : vector<8x1xi32>
    %3 = vector.broadcast %c15_i32 : i32 to vector<8x1xi32>
    %4 = arith.minsi %3, %2 : vector<8x1xi32>
    %c0_1 = arith.constant 0 : index
    %c0_2 = arith.constant 0 : index
    %5 = vector.load %arg1[%c0_1, %c0_2] : memref<8x32xf32, #tpu.memory_space<vmem>>, vector<8x32xf32>
    %6 = tpu.iota {dimensions = array<i32: 1>} : vector<8x16xi32>
    %7 = vector.broadcast %4 : vector<8x1xi32> to vector<8x16xi32>
    %8 = arith.cmpi eq, %6, %7 : vector<8x16xi32>
    %9 = arith.extui %8 : vector<8x16xi1> to vector<8x16xi32>
    %10 = arith.sitofp %9 : vector<8x16xi32> to vector<8x16xf32>
    %c0_3 = arith.constant 0 : index
    %c0_4 = arith.constant 0 : index
    %11 = vector.load %arg2[%c0_3, %c0_4] : memref<16x384xf32, #tpu.memory_space<vmem>>, vector<16x384xf32>
    %cst = arith.constant dense<0.000000e+00> : vector<8x384xf32>
    %12 = tpu.matmul %10, %11, %cst {dimension_numbers = #tpu.dot_dimension_numbers<[1], [0], [0], [1], [0, 0, 1, 1], [], []>} : vector<8x16xf32>, vector<16x384xf32>, vector<8x384xf32> -> vector<8x384xf32>
    %c0_5 = arith.constant 0 : index
    %c0_6 = arith.constant 0 : index
    %13 = vector.load %arg3[%c0_5, %c0_6] : memref<128x384xf32, #tpu.memory_space<vmem>>, vector<32x384xf32>
    %cst_7 = arith.constant dense<0.000000e+00> : vector<8x384xf32>
    %14 = tpu.matmul %5, %13, %cst_7 {dimension_numbers = #tpu.dot_dimension_numbers<[1], [0], [0], [1], [0, 0, 1, 1], [], []>} : vector<8x32xf32>, vector<32x384xf32>, vector<8x384xf32> -> vector<8x384xf32>
    %15 = vector.extract_strided_slice %12 {offsets = [0, 0], sizes = [8, 128], strides = [1, 1]} : vector<8x384xf32> to vector<8x128xf32>
    %16 = vector.extract_strided_slice %14 {offsets = [0, 0], sizes = [8, 128], strides = [1, 1]} : vector<8x384xf32> to vector<8x128xf32>
    %17 = arith.addf %15, %16 : vector<8x128xf32>
    %18 = arith.negf %17 : vector<8x128xf32>
    %19 = math.exp %18 : vector<8x128xf32>
    %cst_8 = arith.constant 1.000000e+00 : f32
    %20 = vector.broadcast %cst_8 : f32 to vector<8x128xf32>
    %21 = arith.addf %20, %19 : vector<8x128xf32>
    %22 = arith.divf %20, %21 : vector<8x128xf32>
    %23 = vector.extract_strided_slice %12 {offsets = [0, 128], sizes = [8, 128], strides = [1, 1]} : vector<8x384xf32> to vector<8x128xf32>
    %24 = vector.extract_strided_slice %14 {offsets = [0, 128], sizes = [8, 128], strides = [1, 1]} : vector<8x384xf32> to vector<8x128xf32>
    %25 = arith.addf %23, %24 : vector<8x128xf32>
    %26 = arith.negf %25 : vector<8x128xf32>
    %27 = math.exp %26 : vector<8x128xf32>
    %cst_9 = arith.constant 1.000000e+00 : f32
    %28 = vector.broadcast %cst_9 : f32 to vector<8x128xf32>
    %29 = arith.addf %28, %27 : vector<8x128xf32>
    %30 = arith.divf %28, %29 : vector<8x128xf32>
    %31 = vector.extract_strided_slice %12 {offsets = [0, 256], sizes = [8, 128], strides = [1, 1]} : vector<8x384xf32> to vector<8x128xf32>
    %32 = vector.extract_strided_slice %14 {offsets = [0, 256], sizes = [8, 128], strides = [1, 1]} : vector<8x384xf32> to vector<8x128xf32>
    %c0_10 = arith.constant 0 : index
    %c0_11 = arith.constant 0 : index
    %33 = vector.load %arg4[%c0_10, %c0_11] : memref<1x128xf32, #tpu.memory_space<vmem>>, vector<1x128xf32>
    %34 = vector.broadcast %33 : vector<1x128xf32> to vector<8x128xf32>
    %35 = arith.addf %32, %34 : vector<8x128xf32>
    %36 = arith.mulf %22, %35 : vector<8x128xf32>
    %37 = arith.addf %31, %36 : vector<8x128xf32>
    %38 = math.tanh %37 : vector<8x128xf32>
    %39 = vector.extract_strided_slice %30 {offsets = [0, 0], sizes = [8, 32], strides = [1, 1]} : vector<8x128xf32> to vector<8x32xf32>
    %cst_12 = arith.constant 1.000000e+00 : f32
    %40 = vector.broadcast %cst_12 : f32 to vector<8x32xf32>
    %41 = arith.subf %40, %39 : vector<8x32xf32>
    %42 = vector.extract_strided_slice %38 {offsets = [0, 0], sizes = [8, 32], strides = [1, 1]} : vector<8x128xf32> to vector<8x32xf32>
    %43 = arith.mulf %41, %42 : vector<8x32xf32>
    %44 = vector.extract_strided_slice %30 {offsets = [0, 0], sizes = [8, 32], strides = [1, 1]} : vector<8x128xf32> to vector<8x32xf32>
    %45 = arith.mulf %44, %5 : vector<8x32xf32>
    %46 = arith.addf %43, %45 : vector<8x32xf32>
    %c0_13 = arith.constant 0 : index
    %c0_14 = arith.constant 0 : index
    %47 = vector.load %arg5[%c0_13, %c0_14] : memref<8x32xf32, #tpu.memory_space<vmem>>, vector<8x32xf32>
    tpu.vector_store %arg5[%c0_13, %c0_14], %46 {strides = array<i32>} : memref<8x32xf32, #tpu.memory_space<vmem>>, vector<8x32xf32>,
    return
  }
}

</mosaic_0001>

<llo_original>
// kernel: word_decoder_forward.1
$region0: #{word_decoder_forward.1}
  #allocation0 [shape = 'u32[]', space=smem, size = 0x4, offset = 0x4, fixed_abs, tag = 'smem constant byte address 0x4 - core index']
  #allocation1 [shape = 'u32[72,128]{1,0:T(1,128)}', space=vmem, size = 0x9000, scoped, tag = 'internal scratch']
  %s0 = inlined_call_operand.vmem [shape: s32[8,1], index: 0, kind: input, shape index: {}]
  %s1 = inlined_call_operand.hbm [shape: f32[8,32], index: 1, kind: input, shape index: {}, may-alias: {1,5}]
  %s2 = inlined_call_operand.hbm [shape: f32[16,384], index: 2, kind: input, shape index: {}]
  %s3 = inlined_call_operand.hbm [shape: f32[128,384], index: 3, kind: input, shape index: {}]
  %s4 = inlined_call_operand.vmem [shape: f32[1,128], index: 4, kind: input, shape index: {}]
  %s5 = inlined_call_operand.hbm [shape: f32[8,32], index: 5, kind: output, shape index: {}, may-alias: {1,5}]
  %s6 = sld [smem:[#allocation0]]
  $region42: #{word_decoder_forward.1} parent=0
    _
  %s8 = ssub.s32 1, %s6
  %s9 = scalar_select 0, %s8, %s6
  $region1: #{word_decoder_forward.1} parent=0
    #allocation2 [shape = 'u8[4096]{0}', space=vmem, size = 0x1000, scoped, tag = 'input window, operand 1, single buffered']
    #allocation3 [shape = 's32[1]{0}', space=sflag, size = 0x4, scoped, tag = 'scoped memory for word_decoder_forward.1']
    #allocation4 [shape = 's32[1]{0}', space=sflag, size = 0x4, scoped, tag = 'scoped memory for word_decoder_forward.1']
    #allocation5 [shape = 'u8[24576]{0}', space=vmem, size = 0x6000, scoped, tag = 'input window, operand 2, single buffered']
    #allocation6 [shape = 's32[1]{0}', space=sflag, size = 0x4, scoped, tag = 'scoped memory for word_decoder_forward.1']
    #allocation7 [shape = 'u8[196608]{0}', space=vmem, size = 0x30000, scoped, tag = 'input window, operand 3, single buffered']
    #allocation8 [shape = 'u8[4096]{0}', space=vmem, size = 0x1000, scoped, tag = 'output window, operand 0, single buffered']
    %10 = vsyncpa [#allocation3], 0
    %11 = vsyncpa [#allocation6], 0
    %12 = vsyncpa [#allocation4], 0
    // Predicated region
    $region2: #{word_decoder_forward.1} parent=1 // pred_check
      _
    $region3: #{word_decoder_forward.1} parent=1 // pred_check_branch
      %14 = sbr.rel (0) target = $region5
    $region4: #{word_decoder_forward.1} parent=1 // pred_region
      _
    $region5: #{word_decoder_forward.1} parent=1 // pred_fallthru
      _
    // Predicated region
    $region6: #{word_decoder_forward.1} parent=1 // pred_check
      _
    $region7: #{word_decoder_forward.1} parent=1 // pred_check_branch
      %16 = sbr.rel (0) target = $region9
    $region8: #{word_decoder_forward.1} parent=1 // pred_region
      %18 = vsyncadd [#allocation3], 0
      %s20 = sshll.u32 %s1, 4
      %s21 = int_to_ptr.hbm [resolvable:$true] %s20
      %s22 = sshll.u32 [#allocation2], 4
      %s23 = int_to_ptr.vmem [resolvable:$true] %s22
      %25 = dma.hbm_to_vmem [thread:$0]  %s21, 128, %s23, [#allocation3]
    $region9: #{word_decoder_forward.1} parent=1 // pred_fallthru
      _
    // Predicated region
    $region10: #{word_decoder_forward.1} parent=1 // pred_check
      _
    $region11: #{word_decoder_forward.1} parent=1 // pred_check_branch
      %27 = sbr.rel (0) target = $region13
    $region12: #{word_decoder_forward.1} parent=1 // pred_region
      %29 = vsyncadd [#allocation6], 0
      %s30 = sshll.u32 %s2, 4
      %s31 = int_to_ptr.hbm [resolvable:$true] %s30
      %s32 = sshll.u32 [#allocation5], 4
      %s33 = int_to_ptr.vmem [resolvable:$true] %s32
      %38 = dma.hbm_to_vmem [thread:$0]  %s31, 768, %s33, [#allocation6], 384, 384, 24
    $region13: #{word_decoder_forward.1} parent=1 // pred_fallthru
      _
    // Predicated region
    $region14: #{word_decoder_forward.1} parent=1 // pred_check
      _
    $region15: #{word_decoder_forward.1} parent=1 // pred_check_branch
      %40 = sbr.rel (0) target = $region17
    $region16: #{word_decoder_forward.1} parent=1 // pred_region
      %42 = vsyncadd [#allocation6], 0
      %s43 = sshll.u32 %s3, 4
      %s44 = int_to_ptr.hbm [resolvable:$true] %s43
      %s45 = sshll.u32 [#allocation7], 4
      %s46 = int_to_ptr.vmem [resolvable:$true] %s45
      %51 = dma.hbm_to_vmem [thread:$0]  %s44, 6144, %s46, [#allocation6], 384, 384, 24
    $region17: #{word_decoder_forward.1} parent=1 // pred_fallthru
      _
    // Predicated region
    $region18: #{word_decoder_forward.1} parent=1 // pred_check
      _
    $region19: #{word_decoder_forward.1} parent=1 // pred_check_branch
      %53 = sbr.rel (0) target = $region21
    $region20: #{word_decoder_forward.1} parent=1 // pred_region
      _
    $region21: #{word_decoder_forward.1} parent=1 // pred_fallthru
      _
    // Predicated region
    $region22: #{word_decoder_forward.1} parent=1 // pred_check
      _
    $region23: #{word_decoder_forward.1} parent=1 // pred_check_branch
      %55 = sbr.rel (0) target = $region25
    $region24: #{word_decoder_forward.1} parent=1 // pred_region
      %57 = dma.done [#allocation3], 128
    $region25: #{word_decoder_forward.1} parent=1 // pred_fallthru
      _
    // Predicated region
    $region26: #{word_decoder_forward.1} parent=1 // pred_check
      _
    $region27: #{word_decoder_forward.1} parent=1 // pred_check_branch
      %59 = sbr.rel (0) target = $region29
    $region28: #{word_decoder_forward.1} parent=1 // pred_region
      %61 = dma.done [#allocation6], 768
    $region29: #{word_decoder_forward.1} parent=1 // pred_fallthru
      _
    // Predicated region
    $region30: #{word_decoder_forward.1} parent=1 // pred_check
      _
    $region31: #{word_decoder_forward.1} parent=1 // pred_check_branch
      %63 = sbr.rel (0) target = $region33
    $region32: #{word_decoder_forward.1} parent=1 // pred_region
      %65 = dma.done [#allocation6], 6144
    $region33: #{word_decoder_forward.1} parent=1 // pred_fallthru
      _
    %v66 = vld [vmem:[%s0] sm:$0xff]
    %vm67 = vcmp.gt.s32.totalorder %v66, 0
    %v68 = vsel %vm67, %v66, 0
    %vm69 = vcmp.lt.s32.totalorder %v68, 15
    %v70 = vsel %vm69, %v68, 15
    %v71 = vld [vmem:[#allocation2] sm:$0xff]
    %v72 = vlaneseq
    %v73 = vand.u32 %v72, 127
    %74 = vset.pattern.permute.xlu0 0
    %75 = vperm.xlu0 %74, %v70
    %v76 = vpop.permute.xlu0 %75
    %vm77 = vcmp.eq.s32.totalorder %v73, %v76
    %v78 = vsel %vm77, 1, 0
    %v79 = vcvt.s32.f32 %v78
    %v80 = vld [vmem:[#allocation5] sm:$0xff]
    %v81 = vld [vmem:[#allocation5 + $0x8] sm:$0xff]
    %v82 = vld [vmem:[#allocation5 + $0x10] sm:$0xff]
    %v83 = vld [vmem:[#allocation5 + $0x18] sm:$0xff]
    %v84 = vld [vmem:[#allocation5 + $0x20] sm:$0xff]
    %v85 = vld [vmem:[#allocation5 + $0x28] sm:$0xff]
    %vm86 = vcmask 130048
    %v88 = vsel %vm86, %v79, 0
    %90 = vmatpush.msra.mxu0 0.0
    %91 = vmatpush.msra.mxu0 0.0
    %92 = vmatpush.msra.mxu0 0.0
    %93 = vmatpush.msra.mxu0 0.0
    %94 = vmatpush.msra.mxu0 0.0
    %95 = vmatpush.msra.mxu0 0.0
    %96 = vmatpush.msra.mxu0 0.0
    %97 = vmatpush.msra.mxu0 0.0
    %98 = vmatpush.msra.mxu0 0.0
    %99 = vmatpush.msra.mxu0 0.0
    %100 = vmatpush.msra.mxu0 0.0
    %101 = vmatpush.msra.mxu0 0.0
    %102 = vmatpush.msra.mxu0 0.0
    %103 = vmatpush.msra.mxu0 0.0
    %104 = vmatpush.msra.mxu0 %v83
    %105 = vmatpush.msra.mxu0 %v80
    %106 = vmatmul.f32.gmra.mxu0 %v88
    %v107 = vpop.f32.mrf.mxu0
    %v108 = vadd.f32 0.0, %v107
    %109 = vdwg.mxu0
    %110 = vmatpush.msra.mxu0 0.0
    %111 = vmatpush.msra.mxu0 0.0
    %112 = vmatpush.msra.mxu0 0.0
    %113 = vmatpush.msra.mxu0 0.0
    %114 = vmatpush.msra.mxu0 0.0
    %115 = vmatpush.msra.mxu0 0.0
    %116 = vmatpush.msra.mxu0 0.0
    %117 = vmatpush.msra.mxu0 0.0
    %118 = vmatpush.msra.mxu0 0.0
    %119 = vmatpush.msra.mxu0 0.0
    %120 = vmatpush.msra.mxu0 0.0
    %121 = vmatpush.msra.mxu0 0.0
    %122 = vmatpush.msra.mxu0 0.0
    %123 = vmatpush.msra.mxu0 0.0
    %124 = vmatpush.msra.mxu0 %v84
    %125 = vmatpush.msra.mxu0 %v81
    %126 = vmatmul.f32.gmra.mxu0 %v88
    %v127 = vpop.f32.mrf.mxu0
    %v128 = vadd.f32 0.0, %v127
    %129 = vdwg.mxu0
    %130 = vmatpush.msra.mxu0 0.0
    %131 = vmatpush.msra.mxu0 0.0
    %132 = vmatpush.msra.mxu0 0.0
    %133 = vmatpush.msra.mxu0 0.0
    %134 = vmatpush.msra.mxu0 0.0
    %135 = vmatpush.msra.mxu0 0.0
    %136 = vmatpush.msra.mxu0 0.0
    %137 = vmatpush.msra.mxu0 0.0
    %138 = vmatpush.msra.mxu0 0.0
    %139 = vmatpush.msra.mxu0 0.0
    %140 = vmatpush.msra.mxu0 0.0
    %141 = vmatpush.msra.mxu0 0.0
    %142 = vmatpush.msra.mxu0 0.0
    %143 = vmatpush.msra.mxu0 0.0
    %144 = vmatpush.msra.mxu0 %v85
    %145 = vmatpush.msra.mxu0 %v82
    %146 = vmatmul.f32.gmra.mxu0 %v88
    %v147 = vpop.f32.mrf.mxu0
    %v148 = vadd.f32 0.0, %v147
    %149 = vdwg.mxu0
    %v150 = vld [vmem:[#allocation7] sm:$0xff]
    %v151 = vld [vmem:[#allocation7 + $0x8] sm:$0xff]
    %v152 = vld [vmem:[#allocation7 + $0x10] sm:$0xff]
    %v153 = vld [vmem:[#allocation7 + $0x18] sm:$0xff]
    %v154 = vld [vmem:[#allocation7 + $0x20] sm:$0xff]
    %v155 = vld [vmem:[#allocation7 + $0x28] sm:$0xff]
    %v156 = vld [vmem:[#allocation7 + $0x30] sm:$0xff]
    %v157 = vld [vmem:[#allocation7 + $0x38] sm:$0xff]
    %v158 = vld [vmem:[#allocation7 + $0x40] sm:$0xff]
    %v159 = vld [vmem:[#allocation7 + $0x48] sm:$0xff]
    %v160 = vld [vmem:[#allocation7 + $0x50] sm:$0xff]
    %v161 = vld [vmem:[#allocation7 + $0x58] sm:$0xff]
    %vm162 = vcmask 261120
    %v164 = vsel %vm162, %v71, 0
    %166 = vmatpush.msra.mxu0 0.0
    %167 = vmatpush.msra.mxu0 0.0
    %168 = vmatpush.msra.mxu0 0.0
    %169 = vmatpush.msra.mxu0 0.0
    %170 = vmatpush.msra.mxu0 0.0
    %171 = vmatpush.msra.mxu0 0.0
    %172 = vmatpush.msra.mxu0 0.0
    %173 = vmatpush.msra.mxu0 0.0
    %174 = vmatpush.msra.mxu0 0.0
    %175 = vmatpush.msra.mxu0 0.0
    %176 = vmatpush.msra.mxu0 0.0
    %177 = vmatpush.msra.mxu0 0.0
    %178 = vmatpush.msra.mxu0 %v159
    %179 = vmatpush.msra.mxu0 %v156
    %180 = vmatpush.msra.mxu0 %v153
    %181 = vmatpush.msra.mxu0 %v150
    %182 = vmatmul.f32.gmra.mxu0 %v164
    %v183 = vpop.f32.mrf.mxu0
    %v184 = vadd.f32 0.0, %v183
    %185 = vdwg.mxu0
    %186 = vmatpush.msra.mxu0 0.0
    %187 = vmatpush.msra.mxu0 0.0
    %188 = vmatpush.msra.mxu0 0.0
    %189 = vmatpush.msra.mxu0 0.0
    %190 = vmatpush.msra.mxu0 0.0
    %191 = vmatpush.msra.mxu0 0.0
    %192 = vmatpush.msra.mxu0 0.0
    %193 = vmatpush.msra.mxu0 0.0
    %194 = vmatpush.msra.mxu0 0.0
    %195 = vmatpush.msra.mxu0 0.0
    %196 = vmatpush.msra.mxu0 0.0
    %197 = vmatpush.msra.mxu0 0.0
    %198 = vmatpush.msra.mxu0 %v160
    %199 = vmatpush.msra.mxu0 %v157
    %200 = vmatpush.msra.mxu0 %v154
    %201 = vmatpush.msra.mxu0 %v151
    %202 = vmatmul.f32.gmra.mxu0 %v164
    %v203 = vpop.f32.mrf.mxu0
    %v204 = vadd.f32 0.0, %v203
    %205 = vdwg.mxu0
    %206 = vmatpush.msra.mxu0 0.0
    %207 = vmatpush.msra.mxu0 0.0
    %208 = vmatpush.msra.mxu0 0.0
    %209 = vmatpush.msra.mxu0 0.0
    %210 = vmatpush.msra.mxu0 0.0
    %211 = vmatpush.msra.mxu0 0.0
    %212 = vmatpush.msra.mxu0 0.0
    %213 = vmatpush.msra.mxu0 0.0
    %214 = vmatpush.msra.mxu0 0.0
    %215 = vmatpush.msra.mxu0 0.0
    %216 = vmatpush.msra.mxu0 0.0
    %217 = vmatpush.msra.mxu0 0.0
    %218 = vmatpush.msra.mxu0 %v161
    %219 = vmatpush.msra.mxu0 %v158
    %220 = vmatpush.msra.mxu0 %v155
    %221 = vmatpush.msra.mxu0 %v152
    %222 = vmatmul.f32.gmra.mxu0 %v164
    %v223 = vpop.f32.mrf.mxu0
    %v224 = vadd.f32 0.0, %v223
    %225 = vdwg.mxu0
    %v226 = vadd.f32 %v108, %v184
    %v227 = vxor.u32 %v226, 2147483648
    %v228 = vmul.f32 %v227, 1.442695
    %v229 = vpow.pop %v228
    %v230 = vadd.f32 %v229, 1.0
    %v231 = vrcp.pop %v230
    %v232 = vmul.f32 %v230, %v231
    %v233 = vsub.f32 1.0, %v232
    %v234 = vmul.f32 %v231, %v233
    %v235 = vadd.f32 %v231, %v234
    %vm236 = vweird.f32 %v230
    %vm237 = vweird.f32 %v231
    %vm238 = vmor %vm236, %vm237
    %v239 = vsel %vm238, %v231, %v235
    %v240 = vand.u32 2147483647, %v230
    %vm241 = vcmp.eq.f32.partialorder %v240, 8.507059e+37
    %v242 = vand.u32 %v230, 2147483648
    %v243 = vor.u32 1.1754944e-38, %v242
    %v244 = vsel %vm241, %v243, %v239
    %v245 = vmul.f32 1.0, %v244
    %v246 = vadd.f32 %v128, %v204
    %v247 = vxor.u32 %v246, 2147483648
    %v248 = vmul.f32 %v247, 1.442695
    %v249 = vpow.pop %v248
    %v250 = vadd.f32 %v249, 1.0
    %v251 = vrcp.pop %v250
    %v252 = vmul.f32 %v250, %v251
    %v253 = vsub.f32 1.0, %v252
    %v254 = vmul.f32 %v251, %v253
    %v255 = vadd.f32 %v251, %v254
    %vm256 = vweird.f32 %v250
    %vm257 = vweird.f32 %v251
    %vm258 = vmor %vm256, %vm257
    %v259 = vsel %vm258, %v251, %v255
    %v260 = vand.u32 2147483647, %v250
    %vm261 = vcmp.eq.f32.partialorder %v260, 8.507059e+37
    %v262 = vand.u32 %v250, 2147483648
    %v263 = vor.u32 1.1754944e-38, %v262
    %v264 = vsel %vm261, %v263, %v259
    %v265 = vmul.f32 1.0, %v264
    %v266 = vld [vmem:[%s4] sm:$0x1]
    %v268 = vperm.slane %v266, 0
    %v270 = vadd.f32 %v224, %v268
    %v271 = vmul.f32 %v245, %v270
    %v272 = vadd.f32 %v148, %v271
    %v273 = vtanh.pop %v272
    %v274 = vsub.f32 1.0, %v265
    %v275 = vmul.f32 %v274, %v273
    %v276 = vmul.f32 %v265, %v71
    %v277 = vadd.f32 %v275, %v276
    %278 = vst.msk [vmem:[#allocation8] sm:$0xff] %vm162, %v277
    // Predicated region
    $region34: #{word_decoder_forward.1} parent=1 // pred_check
      _
    $region35: #{word_decoder_forward.1} parent=1 // pred_check_branch
      %280 = sbr.rel (0) target = $region37
    $region36: #{word_decoder_forward.1} parent=1 // pred_region
      %282 = vsyncadd [#allocation4], 0
      %s284 = sshll.u32 [#allocation8], 4
      %s285 = int_to_ptr.vmem [resolvable:$true] %s284
      %s286 = sshll.u32 %s5, 4
      %s287 = int_to_ptr.hbm [resolvable:$true] %s286
      %289 = dma.vmem_to_hbm [thread:$0]  %s285, 128, %s287, [#allocation4]
    $region37: #{word_decoder_forward.1} parent=1 // pred_fallthru
      _
    // Predicated region
    $region38: #{word_decoder_forward.1} parent=1 // pred_check
      _
    $region39: #{word_decoder_forward.1} parent=1 // pred_check_branch
      %291 = sbr.rel (0) target = $region41
    $region40: #{word_decoder_forward.1} parent=1 // pred_region
      %293 = dma.done [#allocation4], 128
    $region41: #{word_decoder_forward.1} parent=1 // pred_fallthru
      _
    %294 = vsyncpa [#allocation3], 1
    %295 = vsyncpa [#allocation6], 1
    %296 = vsyncpa [#allocation4], 1

</llo_original>
